<compile_context>
chip_gen: v7x
topology: tpu7x:2x2x1
jax: 0.10.0
libtpu: 0.0.40
codegen_flags: <defaults>
</compile_context>

<pallas_src>
import functools

import jax
import jax.numpy as jnp
from jax import lax
from jax.experimental import pallas as pl
from jax.experimental.pallas import tpu as pltpu

EPS = 1e-06
LANES = 128
SUBLANES = 8
MAX_BLOCK_ROWS = 8192   # (8192, 128) f32 = 4 MiB per input per buffer
MAX_CHUNK_ROWS = 1024   # inner fori_loop sub-chunk (bounds live ranges)
ACC_ROWS = 64           # widened accumulator: 8 independent vreg chains


def _charbonnier_partial_kernel(x_ref, y_ref, acc_ref, *,
                                block_rows, chunk_rows, acc_rows,
                                blocks_per_shard, n_valid_rows,
                                last_full_block, has_masked_blocks):
    """Accumulates an (acc_rows, 128) f32 partial sum of sqrt((x-y)^2+eps)."""
    c = pl.program_id(0)            # shard axis ("parallel")
    i = pl.program_id(1)            # block-within-shard axis (reduction)
    g = c * blocks_per_shard + i    # logical global block index (may overrun)

    @pl.when(i == 0)
    def _():
        acc_ref[...] = jnp.zeros_like(acc_ref)

    n_chunks = block_rows // chunk_rows
    groups = chunk_rows // acc_rows

    def accumulate(masked):
        def body(t, carry):
            off = pl.multiple_of(t * chunk_rows, chunk_rows)
            xc = x_ref[pl.ds(off, chunk_rows), :].astype(jnp.float32)
            yc = y_ref[pl.ds(off, chunk_rows), :].astype(jnp.float32)
            d = xc - yc
            err = jnp.sqrt(d * d + jnp.float32(EPS))
            if masked:
                # Zero rows past the valid range.  Also fully zeroes the
                # clamped/duplicated overrun block of the 2-way shard (its
                # g * block_rows already exceeds n_valid_rows).
                row = lax.broadcasted_iota(jnp.int32, err.shape, 0)
                global_row = g * block_rows + off + row
                err = jnp.where(global_row < n_valid_rows, err, jnp.float32(0.0))
            # Pure-VPU reduction into 8 (or fewer) independent accumulator vregs.
            acc_ref[...] += err.reshape(groups, acc_rows, LANES).sum(axis=0)
            return carry

        lax.fori_loop(0, n_chunks, body, 0, unroll=True)

    if has_masked_blocks:
        @pl.when(g < last_full_block)
        def _():
            accumulate(masked=False)

        @pl.when(g >= last_full_block)
        def _():
            accumulate(masked=True)
    else:
        accumulate(masked=False)


def _pick_block_rows(rows):
    """Largest power-of-two row count (>=8) that fits in `rows`, capped."""
    br = SUBLANES
    while br * 2 <= min(rows, MAX_BLOCK_ROWS):
        br *= 2
    return br


def _charbonnier_loss_impl(x, y):
    assert x.shape == y.shape, "x and y must have the same shape"
    n = x.size
    xf = jnp.ravel(x)
    yf = jnp.ravel(y)
    rows = n // LANES

    total = jnp.float32(0.0)
    tail_start = 0

    if rows >= SUBLANES:
        n_main = rows * LANES
        tail_start = n_main
        # Lane-dense (rows, 128) slab.  For lane-divisible n this is a free
        # bitcast reshape of the ravel; for ragged n the prefix slice may
        # materialize one copy (uncommon case; main data path is copy-free).
        x2d = (xf if n_main == n else xf[:n_main]).reshape(rows, LANES)
        y2d = (yf if n_main == n else yf[:n_main]).reshape(rows, LANES)

        block_rows = _pick_block_rows(rows)
        chunk_rows = min(MAX_CHUNK_ROWS, block_rows)
        acc_rows = min(ACC_ROWS, block_rows)
        total_blocks = pl.cdiv(rows, block_rows)

        # Unconditional 2-way shard of the block stream whenever there is more
        # than one block (so an odd block count no longer serializes on one
        # TensorCore).  The overrun block (if any) is clamped in the index_map
        # and fully masked in-kernel.
        num_shards = 2 if total_blocks >= 2 else 1
        blocks_per_shard = pl.cdiv(total_blocks, num_shards)

        last_full_block = rows // block_rows     # blocks < this need no mask
        has_masked_blocks = (rows % block_rows != 0) or \
                            (num_shards * blocks_per_shard != total_blocks)

        def in_map(c, i):
            # Clamp so the duplicated overrun block re-reads valid memory.
            return (jnp.minimum(c * blocks_per_shard + i, total_blocks - 1), 0)

        kernel = functools.partial(
            _charbonnier_partial_kernel,
            block_rows=block_rows,
            chunk_rows=chunk_rows,
            acc_rows=acc_rows,
            blocks_per_shard=blocks_per_shard,
            n_valid_rows=rows,
            last_full_block=last_full_block,
            has_masked_blocks=has_masked_blocks,
        )

        partials = pl.pallas_call(
            kernel,
            out_shape=jax.ShapeDtypeStruct((num_shards * acc_rows, LANES),
                                           jnp.float32),
            grid_spec=pltpu.PrefetchScalarGridSpec(
                num_scalar_prefetch=0,
                grid=(num_shards, blocks_per_shard),
                in_specs=[
                    pl.BlockSpec((block_rows, LANES), in_map),
                    pl.BlockSpec((block_rows, LANES), in_map),
                ],
                out_specs=pl.BlockSpec((acc_rows, LANES), lambda c, i: (c, 0)),
            ),
            # Shard axis stays "parallel" for safety on 1-TC chips; on v7x,
            # pltpu.CORE_PARALLEL can be substituted after trace verification.
            compiler_params=pltpu.CompilerParams(
                dimension_semantics=("parallel", "arbitrary"),
                vmem_limit_bytes=48 * 1024 * 1024,
            ),
        )(x2d, y2d)
        total = total + jnp.sum(partials)

    if tail_start < n:
        # Sub-128-element lane remainder (rare): plain jnp, avoids padding or
        # copying the full arrays just to reach lane divisibility.
        dx = xf[tail_start:].astype(jnp.float32) - yf[tail_start:].astype(jnp.float32)
        total = total + jnp.sum(jnp.sqrt(dx * dx + jnp.float32(EPS)))

    return total / jnp.float32(n)


charbonnier_loss = jax.jit(_charbonnier_loss_impl)


def charbonnier_loss_ref(x, y):
    d = x.astype(jnp.float32) - y.astype(jnp.float32)
    return jnp.mean(jnp.sqrt(d * d + EPS))


if __name__ == "__main__":
    key = jax.random.PRNGKey(0)

    # Main NCHW test shape (lane-divisible case, copy-free path).
    kx, ky = jax.random.split(key)
    shape = (2, 4, 16, 16)
    x = jax.random.normal(kx, shape, dtype=jnp.float32)
    y = jax.random.normal(ky, shape, dtype=jnp.float32)
    loss = charbonnier_loss(x, y)
    jax.block_until_ready(loss)
    ref = charbonnier_loss_ref(x, y)
    assert jnp.allclose(loss, ref, rtol=1e-5, atol=1e-6), (loss, ref)

    # Ragged shape: exercises the masked last block, the 2-shard grid and the
    # jnp lane-remainder path.
    kx2, ky2 = jax.random.split(kx)
    shape2 = (2, 3, 17, 19)
    x2 = jax.random.normal(kx2, shape2, dtype=jnp.float32)
    y2 = jax.random.normal(ky2, shape2, dtype=jnp.float32)
    loss2 = charbonnier_loss(x2, y2)
    jax.block_until_ready(loss2)
    ref2 = charbonnier_loss_ref(x2, y2)
    assert jnp.allclose(loss2, ref2, rtol=1e-5, atol=1e-6), (loss2, ref2)

    print("KERNEL_OK")
</pallas_src>

<mosaic_0001>
module attributes {stable_mosaic.version = 11 : i64} {
  func.func @_charbonnier_partial_kernel(%arg0: i32, %arg1: i32, %arg2: memref<16x128xf32, #tpu.memory_space<vmem>>, %arg3: memref<16x128xf32, #tpu.memory_space<vmem>>, %arg4: memref<16x128xf32, #tpu.memory_space<vmem>>) attributes {dimension_semantics = [#tpu.dimension_semantics<parallel>, #tpu.dimension_semantics<arbitrary>], iteration_bounds = array<i64: 1, 1>, scalar_prefetch = 0 : i64, scratch_operands = 0 : i64, tpu.core_type = #tpu.core_type<tc>, window_params = [{transform_indices = @transform_0, window_bounds = array<i64: 16, 128>}, {transform_indices = @transform_1, window_bounds = array<i64: 16, 128>}, {transform_indices = @transform_2, window_bounds = array<i64: 16, 128>}]} {
    %c0_i32 = arith.constant 0 : i32
    %0 = arith.cmpi eq, %arg1, %c0_i32 : i32
    %1 = arith.extui %0 : i1 to i32
    %c0_i32_0 = arith.constant 0 : i32
    %2 = arith.cmpi ne, %1, %c0_i32_0 : i32
    scf.if %2 {
      %cst_8 = arith.constant 0.000000e+00 : f32
      %19 = vector.broadcast %cst_8 : f32 to vector<16x128xf32>
      %c0_9 = arith.constant 0 : index
      %c0_10 = arith.constant 0 : index
      %20 = vector.load %arg4[%c0_9, %c0_10] : memref<16x128xf32, #tpu.memory_space<vmem>>, vector<16x128xf32>
      tpu.vector_store %arg4[%c0_9, %c0_10], %19 {strides = array<i32>} : memref<16x128xf32, #tpu.memory_space<vmem>>, vector<16x128xf32>,
    } else {
    }
    %c0_i32_1 = arith.constant 0 : i32
    %c16_i32 = arith.constant 16 : i32
    %3 = arith.muli %c0_i32_1, %c16_i32 : i32
    %4 = tpu.assume_multiple %3, 16 : i32
    %5 = arith.index_cast %4 : i32 to index
    %c0 = arith.constant 0 : index
    %6 = vector.load %arg2[%5, %c0] : memref<16x128xf32, #tpu.memory_space<vmem>>, vector<16x128xf32>
    %7 = arith.index_cast %4 : i32 to index
    %c0_2 = arith.constant 0 : index
    %8 = vector.load %arg3[%7, %c0_2] : memref<16x128xf32, #tpu.memory_space<vmem>>, vector<16x128xf32>
    %9 = arith.subf %6, %8 : vector<16x128xf32>
    %10 = arith.mulf %9, %9 : vector<16x128xf32>
    %cst = arith.constant 9.99999997E-7 : f32
    %11 = vector.broadcast %cst : f32 to vector<16x128xf32>
    %12 = arith.addf %10, %11 : vector<16x128xf32>
    %13 = math.sqrt %12 : vector<16x128xf32>
    %c0_3 = arith.constant 0 : index
    %c0_4 = arith.constant 0 : index
    %14 = vector.load %arg4[%c0_3, %c0_4] : memref<16x128xf32, #tpu.memory_space<vmem>>, vector<16x128xf32>
    %15 = vector.shape_cast %13 : vector<16x128xf32> to vector<1x16x128xf32>
    %cst_5 = arith.constant dense<0.000000e+00> : vector<16x128xf32>
    %16 = vector.multi_reduction <add>, %15, %cst_5 [0] : vector<1x16x128xf32> to vector<16x128xf32>
    %17 = arith.addf %14, %16 : vector<16x128xf32>
    %c0_6 = arith.constant 0 : index
    %c0_7 = arith.constant 0 : index
    %18 = vector.load %arg4[%c0_6, %c0_7] : memref<16x128xf32, #tpu.memory_space<vmem>>, vector<16x128xf32>
    tpu.vector_store %arg4[%c0_6, %c0_7], %17 {strides = array<i32>} : memref<16x128xf32, #tpu.memory_space<vmem>>, vector<16x128xf32>,
    %c1_i32 = arith.constant 1 : i32
    return
  }
  func.func @transform_0(%arg0: i32, %arg1: i32) -> (i32, i32) {
    %c1_i32 = arith.constant 1 : i32
    %0 = arith.muli %arg0, %c1_i32 : i32
    %1 = arith.addi %0, %arg1 : i32
    %c0_i32 = arith.constant 0 : i32
    %2 = arith.minsi %1, %c0_i32 : i32
    %c0_i32_0 = arith.constant 0 : i32
    %c0_i32_1 = arith.constant 0 : i32
    return %2, %c0_i32_0 : i32, i32
  }
  func.func @transform_1(%arg0: i32, %arg1: i32) -> (i32, i32) {
    %c1_i32 = arith.constant 1 : i32
    %0 = arith.muli %arg0, %c1_i32 : i32
    %1 = arith.addi %0, %arg1 : i32
    %c0_i32 = arith.constant 0 : i32
    %2 = arith.minsi %1, %c0_i32 : i32
    %c0_i32_0 = arith.constant 0 : i32
    %c0_i32_1 = arith.constant 0 : i32
    return %2, %c0_i32_0 : i32, i32
  }
  func.func @transform_2(%arg0: i32, %arg1: i32) -> (i32, i32) {
    %c0_i32 = arith.constant 0 : i32
    %c0_i32_0 = arith.constant 0 : i32
    return %arg0, %c0_i32 : i32, i32
  }
}

</mosaic_0001>

<llo_original>
// kernel: _charbonnier_loss_impl.1
$region0: #{_charbonnier_loss_impl.1}
  #allocation0 [shape = 'u32[]', space=smem, size = 0x4, offset = 0x4, fixed_abs, tag = 'smem constant byte address 0x4 - core index']
  #allocation1 [shape = 'u32[144,128]{1,0:T(1,128)}', space=vmem, size = 0x12000, scoped, tag = 'internal scratch']
  %s0 = inlined_call_operand.vmem [shape: f32[16,128], index: 0, kind: input, shape index: {}]
  %s1 = inlined_call_operand.vmem [shape: f32[16,128], index: 1, kind: input, shape index: {}]
  %s2 = inlined_call_operand.vmem [shape: f32[16,128], index: 2, kind: output, shape index: {}]
  %s3 = sld [smem:[#allocation0]]
  $region22: #{_charbonnier_loss_impl.1} parent=0
    _
  %s5 = ssub.s32 1, %s3
  %s6 = scalar_select 0, %s5, %s3
  // Predicated region
  $region2: #{_charbonnier_loss_impl.1} parent=0 // pred_check
    _
  $region3: #{_charbonnier_loss_impl.1} parent=0 // pred_check_branch
    %8 = sbr.rel (0) target = $region5
  $region4: #{_charbonnier_loss_impl.1} parent=0 // pred_region
    %s9 = sadd.s32 0, 0
    %p10 = scmp.lt.s32.totalorder %s9, 0
    %s11 = scalar_select %p10, %s9, 0
    %s12 = smul.u32 2, %s11
    %p13 = scmp.lt.s32.totalorder %s12, 1
    %s14 = scalar_select %p13, %s12, 1
    %s15 = smul.addr %s14, 8
    %s16 = scalar_lea.vmem %s0, %s15
    %s17 = sadd.s32 0, 0
    %p18 = scmp.lt.s32.totalorder %s17, 0
    %s19 = scalar_select %p18, %s17, 0
    %s20 = smul.u32 2, %s19
  $region5: #{_charbonnier_loss_impl.1} parent=0 // pred_fallthru
    _
  // Predicated region
  $region6: #{_charbonnier_loss_impl.1} parent=0 // pred_check
    _
  $region7: #{_charbonnier_loss_impl.1} parent=0 // pred_check_branch
    %22 = sbr.rel (0) target = $region9
  $region8: #{_charbonnier_loss_impl.1} parent=0 // pred_region
    %s23 = sadd.s32 0, 0
    %p24 = scmp.lt.s32.totalorder %s23, 0
    %s25 = scalar_select %p24, %s23, 0
    %s26 = smul.u32 2, %s25
    %p27 = scmp.lt.s32.totalorder %s26, 1
    %s28 = scalar_select %p27, %s26, 1
    %s29 = smul.addr %s28, 8
    %s30 = scalar_lea.vmem %s1, %s29
    %s31 = sadd.s32 0, 0
    %p32 = scmp.lt.s32.totalorder %s31, 0
    %s33 = scalar_select %p32, %s31, 0
    %s34 = smul.u32 2, %s33
  $region9: #{_charbonnier_loss_impl.1} parent=0 // pred_fallthru
    _
  %s35 = sadd.s32 0, 0
  %p36 = scmp.lt.s32.totalorder %s35, 0
  %s37 = scalar_select %p36, %s35, 0
  %s38 = smul.u32 2, %s37
  %p39 = scmp.lt.s32.totalorder %s38, 1
  %s40 = scalar_select %p39, %s38, 1
  %s41 = smul.addr %s40, 8
  %s42 = scalar_lea.vmem %s0, %s41
  %s43 = sadd.s32 0, 0
  %p44 = scmp.lt.s32.totalorder %s43, 0
  %s45 = scalar_select %p44, %s43, 0
  %s46 = smul.u32 2, %s45
  %p47 = scmp.lt.s32.totalorder %s46, 1
  %s48 = scalar_select %p47, %s46, 1
  %s49 = smul.addr %s48, 8
  %s50 = scalar_lea.vmem %s1, %s49
  %s51 = sadd.s32 0, 0
  %p52 = scmp.lt.s32.totalorder %s51, 0
  %s53 = scalar_select %p52, %s51, 0
  %s54 = smul.u32 2, %s53
  %p55 = scmp.lt.s32.totalorder %s54, 1
  %s56 = scalar_select %p55, %s54, 1
  %s57 = smul.addr %s56, 8
  %s58 = scalar_lea.vmem %s0, %s57
  %s59 = sadd.s32 0, 0
  %p60 = scmp.lt.s32.totalorder %s59, 0
  %s61 = scalar_select %p60, %s59, 0
  %s62 = smul.u32 2, %s61
  %s63 = sadd.s32 0, 0
  %p64 = scmp.lt.s32.totalorder %s63, 0
  %s65 = scalar_select %p64, %s63, 0
  %s66 = smul.u32 2, %s65
  %p67 = scmp.lt.s32.totalorder %s66, 1
  %s68 = scalar_select %p67, %s66, 1
  %s69 = smul.addr %s68, 8
  %s70 = scalar_lea.vmem %s1, %s69
  %s71 = sadd.s32 0, 0
  %p72 = scmp.lt.s32.totalorder %s71, 0
  %s73 = scalar_select %p72, %s71, 0
  %s74 = smul.u32 2, %s73
  %p75 = scmp.eq.s32.totalorder 0, 0
  // Predicated region
  $region10: #{_charbonnier_loss_impl.1} parent=0 // pred_check
    %p76 = pneg %p75
  $region11: #{_charbonnier_loss_impl.1} parent=0 // pred_check_branch
    %78 = sbr.rel (%p76) target = $region13
  $region12: #{_charbonnier_loss_impl.1} parent=0 // pred_region
    %79 = vst [vmem:[%s2] sm:$0xff] 0.0
    %80 = vst [vmem:[%s2 + $0x8] sm:$0xff] 0.0
  $region13: #{_charbonnier_loss_impl.1} parent=0 // pred_fallthru
    _
  %v81 = vld [vmem:[%s58] sm:$0xff]
  %v82 = vld [vmem:[%s58 + $0x8] sm:$0xff]
  %v83 = vld [vmem:[%s70] sm:$0xff]
  %v84 = vld [vmem:[%s70 + $0x8] sm:$0xff]
  %v85 = vsub.f32 %v81, %v83
  %v86 = vsub.f32 %v82, %v84
  %v87 = vmul.f32 %v85, %v85
  %v88 = vmul.f32 %v86, %v86
  %v89 = vadd.f32 %v87, 1e-06
  %v90 = vadd.f32 %v88, 1e-06
  %v91 = vrsqrt.pop %v89
  %v92 = vmul.f32 %v89, %v91
  %vm93 = vcmp.eq.f32.partialorder %v89, inf
  %v94 = vsel %vm93, %v89, %v92
  %vm95 = vcmp.eq.f32.partialorder %v89, 0.0
  %v96 = vand.u32 %v89, 2147483648
  %v97 = vsel %vm95, %v96, %v94
  %v98 = vrsqrt.pop %v90
  %v99 = vmul.f32 %v90, %v98
  %vm100 = vcmp.eq.f32.partialorder %v90, inf
  %v101 = vsel %vm100, %v90, %v99
  %vm102 = vcmp.eq.f32.partialorder %v90, 0.0
  %v103 = vand.u32 %v90, 2147483648
  %v104 = vsel %vm102, %v103, %v101
  %v105 = vld [vmem:[%s2] sm:$0xff]
  %v106 = vld [vmem:[%s2 + $0x8] sm:$0xff]
  %v107 = vadd.f32 %v97, 0.0
  %v108 = vadd.f32 %v104, 0.0
  %v109 = vadd.f32 %v105, %v107
  %v110 = vadd.f32 %v106, %v108
  %111 = vst [vmem:[%s2] sm:$0xff] %v109
  %112 = vst [vmem:[%s2 + $0x8] sm:$0xff] %v110
  // Predicated region
  $region14: #{_charbonnier_loss_impl.1} parent=0 // pred_check
    _
  $region15: #{_charbonnier_loss_impl.1} parent=0 // pred_check_branch
    %114 = sbr.rel (0) target = $region17
  $region16: #{_charbonnier_loss_impl.1} parent=0 // pred_region
    _
  $region17: #{_charbonnier_loss_impl.1} parent=0 // pred_fallthru
    _
  // Predicated region
  $region18: #{_charbonnier_loss_impl.1} parent=0 // pred_check
    _
  $region19: #{_charbonnier_loss_impl.1} parent=0 // pred_check_branch
    %116 = sbr.rel (0) target = $region21
  $region20: #{_charbonnier_loss_impl.1} parent=0 // pred_region
    _
  $region21: #{_charbonnier_loss_impl.1} parent=0 // pred_fallthru
    _

</llo_original>
